<compile_context>
chip_gen: v6e
topology: v6e:2x2x1
jax: 0.10.0
libtpu: 0.0.40
codegen_flags: <defaults>
</compile_context>

<pallas_src>
import math

import jax
import jax.numpy as jnp
from jax import lax
from jax.experimental import pallas as pl
from jax.experimental.pallas import tpu as pltpu

_HALF_LOG_2PI = 0.5 * math.log(2.0 * math.pi)
_LANE = 128
_SUBLANE = 16            # multiple of 16 covers f32 (8) and bf16 (16) tiling
_MAX_TILE_D = 2048


def _round_up(x, m):
    return ((x + m - 1) // m) * m


def _make_nll_kernel(use_model_std, n_true, tile_n, mask_edge_rows):
    """Hot loop accumulates sum((y-mu)^2) per feature directly into the
    VMEM-resident output block; sigma math is folded into the last step."""
    inv_n = 1.0 / float(n_true)

    def kernel(log_std_ref, mu_ref, y_ref, *rest):
        if use_model_std:
            model_std_ref, out_ref = rest
        else:
            (out_ref,) = rest

        n_step = pl.program_id(1)

        @pl.when(n_step == 0)
        def _init():
            out_ref[...] = jnp.zeros_like(out_ref)

        # Hot loop: cast in registers, squared difference, sublane reduce.
        d = y_ref[...].astype(jnp.float32) - mu_ref[...].astype(jnp.float32)
        if mask_edge_rows:
            # Ragged last N tile: zero out-of-range rows instead of padding
            # mu / y in HBM.  Cheap (compare + select per element).
            row = lax.broadcasted_iota(jnp.int32, d.shape, 0)
            d = jnp.where(row < (n_true - n_step * tile_n), d, 0.0)
        out_ref[...] += jnp.sum(d * d, axis=0, keepdims=True)

        @pl.when(n_step == pl.num_programs(1) - 1)
        def _finalize():
            # Per-feature constants, computed once per D block (off hot path).
            sig = jnp.maximum(jnp.exp(log_std_ref[...]), 1e-4)   # (1, TILE_D)
            if use_model_std:
                ms = model_std_ref[...]
                sig = jnp.sqrt(sig * sig + ms * ms)
            inv_var = 1.0 / (sig * sig)
            out_ref[...] = (out_ref[...] * (0.5 * inv_n)) * inv_var \
                           + jnp.log(sig) + _HALF_LOG_2PI

    return kernel


def homo_gauss_mloglike(log_std, mu, y, model_std=None, *,
                        tile_n=None, tile_d=None,
                        tile_bytes_budget=20 << 20,
                        vmem_limit_bytes=48 << 20):
    """JAX/Pallas equivalent of homo_Gauss_mloglike.forward(mu, y, model_std).

    log_std   : (D,) or (1,) parameter
    mu, y     : (N, D) in float32 or bfloat16 (streamed as-is, f32 accumulation)
    model_std : optional scalar or per-feature ((D,) / (1,)) std, or None
    returns   : (D,) float32 negative mean log-likelihood over dim 0
    """
    mu = jnp.asarray(mu)
    y = jnp.asarray(y)
    allowed = (jnp.dtype(jnp.float32), jnp.dtype(jnp.bfloat16))
    if jnp.dtype(mu.dtype) not in allowed:
        mu = mu.astype(jnp.float32)
    if jnp.dtype(y.dtype) not in allowed:
        y = y.astype(jnp.float32)

    N, D = mu.shape
    if y.shape != (N, D):
        raise ValueError(f"y shape {y.shape} must match mu shape {(N, D)}")

    # ---- D tile (parallel axis) ----
    if tile_d is not None:
        td = min(int(tile_d), D)
        if td < D:
            td = max(_LANE, (td // _LANE) * _LANE)   # lane-dense partial tiles
    elif D < 2 * _LANE:
        td = D                       # single full-width block: contiguous DMA
    else:
        # >= 2 lane-dense D blocks so both v7x TensorCores get work.
        td = min(_round_up((D + 1) // 2, _LANE), _MAX_TILE_D)
    num_d = pl.cdiv(D, td)

    # ---- N tile (reduction axis, last in grid) ----
    bytes_pair = mu.dtype.itemsize + y.dtype.itemsize
    if tile_n is not None:
        tn = int(tile_n)
    else:
        # Size so double-buffered mu+y tiles stay within the VMEM budget.
        tn = tile_bytes_budget // (2 * td * bytes_pair)
    if tn >= N:
        tn = N                       # single block == full dim, no row mask
    else:
        tn = max(_SUBLANE, (tn // _SUBLANE) * _SUBLANE)
    num_n = pl.cdiv(N, tn)
    mask_edge_rows = (N % tn) != 0

    # Tiny per-feature rows stay f32 (negligible bytes).
    log_std_row = jnp.broadcast_to(
        jnp.reshape(jnp.asarray(log_std, jnp.float32), (1, -1)), (1, D))

    # Rows depend only on the D grid index -> not re-streamed per N step.
    row_spec = pl.BlockSpec((1, td), lambda i, j: (0, i))
    tile_spec = pl.BlockSpec((tn, td), lambda i, j: (j, i))

    args = [log_std_row, mu, y]
    in_specs = [row_spec, tile_spec, tile_spec]

    use_model_std = model_std is not None
    if use_model_std:
        ms = jnp.asarray(model_std, jnp.float32)
        if ms.ndim > 1 or (ms.ndim == 1 and ms.shape[0] not in (1, D)):
            # TODO(synk): per-sample (N, D) model_std would need streaming
            # like mu/y; not supported by this per-feature kernel.
            raise ValueError(
                f"model_std must be a scalar or per-feature ({D},); got shape "
                f"{ms.shape}")
        ms_row = jnp.broadcast_to(jnp.reshape(ms, (1, -1)), (1, D))
        args.append(ms_row)
        in_specs.append(row_spec)

    kernel = _make_nll_kernel(use_model_std, N, tn, mask_edge_rows)

    out = pl.pallas_call(
        kernel,
        out_shape=jax.ShapeDtypeStruct((1, D), jnp.float32),
        grid_spec=pltpu.PrefetchScalarGridSpec(
            num_scalar_prefetch=0,
            grid=(num_d, num_n),                     # (D parallel, N reduce)
            in_specs=in_specs,
            out_specs=pl.BlockSpec((1, td), lambda i, j: (0, i)),
        ),
        compiler_params=pltpu.CompilerParams(
            dimension_semantics=("parallel", "arbitrary"),
            vmem_limit_bytes=int(vmem_limit_bytes)),
    )(*args)
    return out[0]


def _reference(log_std, mu, y, model_std=None):
    sig = jnp.maximum(jnp.exp(jnp.asarray(log_std, jnp.float32)), 1e-4)
    if model_std is not None:
        sig = jnp.sqrt(sig ** 2 + jnp.asarray(model_std, jnp.float32) ** 2)
    var = sig ** 2
    logp = -((y - mu) ** 2) / (2.0 * var) - jnp.log(sig) - _HALF_LOG_2PI
    return -jnp.mean(logp, axis=0)


if __name__ == "__main__":
    key = jax.random.PRNGKey(0)
    ks = jax.random.split(key, 6)

    # Small shapes consistent with the module: batch N=8, Ndims D=32.
    N, D = 8, 32
    mu = jax.random.normal(ks[0], (N, D), dtype=jnp.float32)
    y = jax.random.normal(ks[1], (N, D), dtype=jnp.float32)
    log_std = 0.1 * jax.random.normal(ks[2], (D,), dtype=jnp.float32)

    out = jax.block_until_ready(homo_gauss_mloglike(log_std, mu, y))
    ref = _reference(log_std, mu, y)
    assert out.shape == (D,)
    assert jnp.allclose(out, ref, atol=1e-5, rtol=1e-5), (out, ref)

    # model_std branch.
    model_std = 0.5 * jnp.ones((D,), dtype=jnp.float32)
    out2 = jax.block_until_ready(homo_gauss_mloglike(log_std, mu, y, model_std))
    ref2 = _reference(log_std, mu, y, model_std)
    assert jnp.allclose(out2, ref2, atol=1e-5, rtol=1e-5), (out2, ref2)

    # Ragged multi-tile reduction: grid (2, 3) with edge blocks on both axes,
    # exercising the in-kernel row mask (no wrapper-side padding).
    N2, D2 = 300, 200
    mu2 = jax.random.normal(ks[3], (N2, D2), dtype=jnp.float32)
    y2 = jax.random.normal(ks[4], (N2, D2), dtype=jnp.float32)
    log_std2 = 0.1 * jax.random.normal(ks[5], (D2,), dtype=jnp.float32)
    out3 = jax.block_until_ready(
        homo_gauss_mloglike(log_std2, mu2, y2, tile_n=128, tile_d=128))
    ref3 = _reference(log_std2, mu2, y2)
    assert out3.shape == (D2,)
    assert jnp.allclose(out3, ref3, atol=1e-5, rtol=1e-5), (out3, ref3)

    # bf16 inputs streamed directly (no wrapper upcast), f32 accumulation.
    mu_bf = mu2.astype(jnp.bfloat16)
    y_bf = y2.astype(jnp.bfloat16)
    out4 = jax.block_until_ready(
        homo_gauss_mloglike(log_std2, mu_bf, y_bf, tile_n=128, tile_d=128))
    ref4 = _reference(log_std2, mu_bf.astype(jnp.float32),
                      y_bf.astype(jnp.float32))
    assert jnp.allclose(out4, ref4, atol=1e-4, rtol=1e-4), (out4, ref4)

    print("KERNEL_OK")
</pallas_src>

<mosaic_0001>
module attributes {stable_mosaic.version = 11 : i64} {
  func.func @kernel(%arg0: i32, %arg1: i32, %arg2: memref<1x32xf32, #tpu.memory_space<vmem>>, %arg3: memref<8x32xf32, #tpu.memory_space<vmem>>, %arg4: memref<8x32xf32, #tpu.memory_space<vmem>>, %arg5: memref<1x32xf32, #tpu.memory_space<vmem>>) attributes {dimension_semantics = [#tpu.dimension_semantics<parallel>, #tpu.dimension_semantics<arbitrary>], iteration_bounds = array<i64: 1, 1>, scalar_prefetch = 0 : i64, scratch_operands = 0 : i64, tpu.core_type = #tpu.core_type<tc>, window_params = [{transform_indices = @transform_0, window_bounds = array<i64: 1, 32>}, {transform_indices = @transform_1, window_bounds = array<i64: 8, 32>}, {transform_indices = @transform_2, window_bounds = array<i64: 8, 32>}, {transform_indices = @transform_3, window_bounds = array<i64: 1, 32>}]} {
    %c0_i32 = arith.constant 0 : i32
    %0 = arith.cmpi eq, %arg1, %c0_i32 : i32
    %1 = arith.extui %0 : i1 to i32
    %c0_i32_0 = arith.constant 0 : i32
    %2 = arith.cmpi ne, %1, %c0_i32_0 : i32
    scf.if %2 {
      %cst_10 = arith.constant 0.000000e+00 : f32
      %15 = vector.broadcast %cst_10 : f32 to vector<1x32xf32>
      %c0_11 = arith.constant 0 : index
      %c0_12 = arith.constant 0 : index
      %16 = vector.load %arg5[%c0_11, %c0_12] : memref<1x32xf32, #tpu.memory_space<vmem>>, vector<1x32xf32>
      tpu.vector_store %arg5[%c0_11, %c0_12], %15 {strides = array<i32>} : memref<1x32xf32, #tpu.memory_space<vmem>>, vector<1x32xf32>,
    } else {
    }
    %c0 = arith.constant 0 : index
    %c0_1 = arith.constant 0 : index
    %3 = vector.load %arg4[%c0, %c0_1] : memref<8x32xf32, #tpu.memory_space<vmem>>, vector<8x32xf32>
    %c0_2 = arith.constant 0 : index
    %c0_3 = arith.constant 0 : index
    %4 = vector.load %arg3[%c0_2, %c0_3] : memref<8x32xf32, #tpu.memory_space<vmem>>, vector<8x32xf32>
    %5 = arith.subf %3, %4 : vector<8x32xf32>
    %c0_4 = arith.constant 0 : index
    %c0_5 = arith.constant 0 : index
    %6 = vector.load %arg5[%c0_4, %c0_5] : memref<1x32xf32, #tpu.memory_space<vmem>>, vector<1x32xf32>
    %7 = arith.mulf %5, %5 : vector<8x32xf32>
    %cst = arith.constant dense<0.000000e+00> : vector<32xf32>
    %8 = vector.multi_reduction <add>, %7, %cst [0] : vector<8x32xf32> to vector<32xf32>
    %9 = vector.shape_cast %8 : vector<32xf32> to vector<1x32xf32>
    %10 = arith.addf %6, %9 : vector<1x32xf32>
    %c0_6 = arith.constant 0 : index
    %c0_7 = arith.constant 0 : index
    %11 = vector.load %arg5[%c0_6, %c0_7] : memref<1x32xf32, #tpu.memory_space<vmem>>, vector<1x32xf32>
    tpu.vector_store %arg5[%c0_6, %c0_7], %10 {strides = array<i32>} : memref<1x32xf32, #tpu.memory_space<vmem>>, vector<1x32xf32>,
    %c0_i32_8 = arith.constant 0 : i32
    %12 = arith.cmpi eq, %arg1, %c0_i32_8 : i32
    %13 = arith.extui %12 : i1 to i32
    %c0_i32_9 = arith.constant 0 : i32
    %14 = arith.cmpi ne, %13, %c0_i32_9 : i32
    scf.if %14 {
      %c0_10 = arith.constant 0 : index
      %c0_11 = arith.constant 0 : index
      %15 = vector.load %arg2[%c0_10, %c0_11] : memref<1x32xf32, #tpu.memory_space<vmem>>, vector<1x32xf32>
      %16 = math.exp %15 : vector<1x32xf32>
      %cst_12 = arith.constant 9.99999974E-5 : f32
      %17 = vector.broadcast %cst_12 : f32 to vector<1x32xf32>
      %18 = arith.maximumf %16, %17 : vector<1x32xf32>
      %19 = arith.mulf %18, %18 : vector<1x32xf32>
      %cst_13 = arith.constant 1.000000e+00 : f32
      %20 = vector.broadcast %cst_13 : f32 to vector<1x32xf32>
      %21 = arith.divf %20, %19 : vector<1x32xf32>
      %c0_14 = arith.constant 0 : index
      %c0_15 = arith.constant 0 : index
      %22 = vector.load %arg5[%c0_14, %c0_15] : memref<1x32xf32, #tpu.memory_space<vmem>>, vector<1x32xf32>
      %cst_16 = arith.constant 6.250000e-02 : f32
      %23 = vector.broadcast %cst_16 : f32 to vector<1x32xf32>
      %24 = arith.mulf %22, %23 : vector<1x32xf32>
      %25 = arith.mulf %24, %21 : vector<1x32xf32>
      %26 = math.log %18 : vector<1x32xf32>
      %27 = arith.addf %25, %26 : vector<1x32xf32>
      %cst_17 = arith.constant 0.918938517 : f32
      %28 = vector.broadcast %cst_17 : f32 to vector<1x32xf32>
      %29 = arith.addf %27, %28 : vector<1x32xf32>
      %c0_18 = arith.constant 0 : index
      %c0_19 = arith.constant 0 : index
      %30 = vector.load %arg5[%c0_18, %c0_19] : memref<1x32xf32, #tpu.memory_space<vmem>>, vector<1x32xf32>
      tpu.vector_store %arg5[%c0_18, %c0_19], %29 {strides = array<i32>} : memref<1x32xf32, #tpu.memory_space<vmem>>, vector<1x32xf32>,
    } else {
    }
    return
  }
  func.func @transform_0(%arg0: i32, %arg1: i32) -> (i32, i32) {
    %c0_i32 = arith.constant 0 : i32
    %c0_i32_0 = arith.constant 0 : i32
    return %c0_i32, %arg0 : i32, i32
  }
  func.func @transform_1(%arg0: i32, %arg1: i32) -> (i32, i32) {
    %c0_i32 = arith.constant 0 : i32
    return %arg1, %arg0 : i32, i32
  }
  func.func @transform_2(%arg0: i32, %arg1: i32) -> (i32, i32) {
    %c0_i32 = arith.constant 0 : i32
    return %arg1, %arg0 : i32, i32
  }
  func.func @transform_3(%arg0: i32, %arg1: i32) -> (i32, i32) {
    %c0_i32 = arith.constant 0 : i32
    %c0_i32_0 = arith.constant 0 : i32
    return %c0_i32, %arg0 : i32, i32
  }
}

</mosaic_0001>

<llo_original>
// kernel: tpu_custom_call.1
$region0: #{tpu_custom_call.1}
  #allocation0 [shape = 'u32[]', space=smem, size = 0x4, offset = 0x4, fixed_abs, tag = 'smem constant byte address 0x4 - core index']
  #allocation1 [shape = 'u32[144,128]{1,0:T(1,128)}', space=vmem, size = 0x12000, scoped, tag = 'internal scratch']
  %s0 = inlined_call_operand.hbm [shape: f32[1,32], index: 0, kind: input, shape index: {}]
  %s1 = inlined_call_operand.hbm [shape: f32[8,32], index: 1, kind: input, shape index: {}]
  %s2 = inlined_call_operand.hbm [shape: f32[8,32], index: 2, kind: input, shape index: {}]
  %s3 = inlined_call_operand.hbm [shape: f32[1,32], index: 3, kind: output, shape index: {}]
  %s4 = sld [smem:[#allocation0]]
  $region42: #{tpu_custom_call.1} parent=0
    _
  %s6 = ssub.s32 1, %s4
  %s7 = scalar_select 0, %s6, %s4
  $region1: #{tpu_custom_call.1} parent=0
    #allocation2 [shape = 'u8[512]{0}', space=vmem, size = 0x400, scoped, tag = 'input window, operand 0, single buffered']
    #allocation3 [shape = 's32[1]{0}', space=sflag, size = 0x4, scoped, tag = 'scoped memory for tpu_custom_call.1']
    #allocation4 [shape = 's32[1]{0}', space=sflag, size = 0x4, scoped, tag = 'scoped memory for tpu_custom_call.1']
    #allocation5 [shape = 'u8[4096]{0}', space=vmem, size = 0x1000, scoped, tag = 'input window, operand 1, single buffered']
    #allocation6 [shape = 's32[1]{0}', space=sflag, size = 0x4, scoped, tag = 'scoped memory for tpu_custom_call.1']
    #allocation7 [shape = 'u8[4096]{0}', space=vmem, size = 0x1000, scoped, tag = 'input window, operand 2, single buffered']
    #allocation8 [shape = 'u8[512]{0}', space=vmem, size = 0x400, scoped, tag = 'output window, operand 0, single buffered']
    %8 = vsyncpa [#allocation3], 0
    %9 = vsyncpa [#allocation6], 0
    %10 = vsyncpa [#allocation4], 0
    // Predicated region
    $region2: #{tpu_custom_call.1} parent=1 // pred_check
      _
    $region3: #{tpu_custom_call.1} parent=1 // pred_check_branch
      %12 = sbr.rel (0) target = $region5
    $region4: #{tpu_custom_call.1} parent=1 // pred_region
      %s14 = ssub.s32 16, 16
      %15 = vsyncadd [#allocation3], %s14
      %s17 = sshll.u32 [#allocation2], 4
      %s18 = int_to_ptr.vmem [resolvable:$true] %s17
      %20 = dma.hbm_to_vmem [thread:$0]  %s0, 16, %s18, [#allocation3]
    $region5: #{tpu_custom_call.1} parent=1 // pred_fallthru
      _
    // Predicated region
    $region6: #{tpu_custom_call.1} parent=1 // pred_check
      _
    $region7: #{tpu_custom_call.1} parent=1 // pred_check_branch
      %22 = sbr.rel (0) target = $region9
    $region8: #{tpu_custom_call.1} parent=1 // pred_region
      %s24 = ssub.s32 128, 128
      %25 = vsyncadd [#allocation6], %s24
      %s27 = sshll.u32 [#allocation5], 4
      %s28 = int_to_ptr.vmem [resolvable:$true] %s27
      %30 = dma.hbm_to_vmem [thread:$0]  %s1, 128, %s28, [#allocation6]
    $region9: #{tpu_custom_call.1} parent=1 // pred_fallthru
      _
    // Predicated region
    $region10: #{tpu_custom_call.1} parent=1 // pred_check
      _
    $region11: #{tpu_custom_call.1} parent=1 // pred_check_branch
      %32 = sbr.rel (0) target = $region13
    $region12: #{tpu_custom_call.1} parent=1 // pred_region
      %s34 = ssub.s32 128, 128
      %35 = vsyncadd [#allocation6], %s34
      %s37 = sshll.u32 [#allocation7], 4
      %s38 = int_to_ptr.vmem [resolvable:$true] %s37
      %40 = dma.hbm_to_vmem [thread:$0]  %s2, 128, %s38, [#allocation6]
    $region13: #{tpu_custom_call.1} parent=1 // pred_fallthru
      _
    // Predicated region
    $region14: #{tpu_custom_call.1} parent=1 // pred_check
      _
    $region15: #{tpu_custom_call.1} parent=1 // pred_check_branch
      %42 = sbr.rel (0) target = $region17
    $region16: #{tpu_custom_call.1} parent=1 // pred_region
      %43 = dma.done [#allocation3], 16
    $region17: #{tpu_custom_call.1} parent=1 // pred_fallthru
      _
    // Predicated region
    $region18: #{tpu_custom_call.1} parent=1 // pred_check
      _
    $region19: #{tpu_custom_call.1} parent=1 // pred_check_branch
      %45 = sbr.rel (0) target = $region21
    $region20: #{tpu_custom_call.1} parent=1 // pred_region
      %46 = dma.done [#allocation6], 128
    $region21: #{tpu_custom_call.1} parent=1 // pred_fallthru
      _
    // Predicated region
    $region22: #{tpu_custom_call.1} parent=1 // pred_check
      _
    $region23: #{tpu_custom_call.1} parent=1 // pred_check_branch
      %48 = sbr.rel (0) target = $region25
    $region24: #{tpu_custom_call.1} parent=1 // pred_region
      %49 = dma.done [#allocation6], 128
    $region25: #{tpu_custom_call.1} parent=1 // pred_fallthru
      _
    %p50 = scmp.eq.s32.totalorder 0, 0
    // Predicated region
    $region26: #{tpu_custom_call.1} parent=1 // pred_check
      %p51 = pneg %p50
    $region27: #{tpu_custom_call.1} parent=1 // pred_check_branch
      %53 = sbr.rel (%p51) target = $region29
    $region28: #{tpu_custom_call.1} parent=1 // pred_region
      %vm54 = vcmask 253952
      %55 = vst.msk [vmem:[#allocation8] sm:$0x1] %vm54, 0.0
    $region29: #{tpu_custom_call.1} parent=1 // pred_fallthru
      _
    %v56 = vld [vmem:[#allocation7] sm:$0xff]
    %v57 = vld [vmem:[#allocation5] sm:$0xff]
    %v58 = vsub.f32 %v56, %v57
    %v59 = vld [vmem:[#allocation8] sm:$0x1]
    %v60 = vmul.f32 %v58, %v58
    %vm61 = vcmask 261120
    %v62 = vsel %vm61, %v60, 0.0
    %v63 = vrot.slane %v62, 4
    %v64 = vadd.f32 %v62, %v63
    %v65 = vrot.slane %v64, 2
    %v66 = vadd.f32 %v64, %v65
    %v67 = vrot.slane %v66, 1
    %v68 = vadd.f32 %v66, %v67
    %v69 = vadd.f32 %v59, %v68
    %vm70 = vcmask 253952
    %71 = vst.msk [vmem:[#allocation8] sm:$0x1] %vm70, %v69
    // Predicated region
    $region30: #{tpu_custom_call.1} parent=1 // pred_check
      %p72 = pneg %p50
    $region31: #{tpu_custom_call.1} parent=1 // pred_check_branch
      %74 = sbr.rel (%p72) target = $region33
    $region32: #{tpu_custom_call.1} parent=1 // pred_region
      %v75 = vld [vmem:[#allocation2] sm:$0x1]
      %v76 = vmul.f32 %v75, 1.442695
      %v77 = vpow.pop %v76
      %v78 = vmax.f32 %v77, 0.0001
      %v79 = vmul.f32 %v78, %v78
      %v80 = vrcp.pop %v79
      %v81 = vmul.f32 1.0, %v80
      %v82 = vld [vmem:[#allocation8] sm:$0x1]
      %v83 = vmul.f32 %v82, 0.0625
      %v84 = vmul.f32 %v83, %v81
      %v85 = vlog2.pop %v78
      %v86 = vmul.f32 %v85, 0.6931472
      %v87 = vadd.f32 %v84, %v86
      %v88 = vadd.f32 %v87, 0.9189385
      %89 = vst.msk [vmem:[#allocation8] sm:$0x1] %vm70, %v88
    $region33: #{tpu_custom_call.1} parent=1 // pred_fallthru
      _
    // Predicated region
    $region34: #{tpu_custom_call.1} parent=1 // pred_check
      _
    $region35: #{tpu_custom_call.1} parent=1 // pred_check_branch
      %91 = sbr.rel (0) target = $region37
    $region36: #{tpu_custom_call.1} parent=1 // pred_region
      %s93 = ssub.s32 16, 16
      %94 = vsyncadd [#allocation4], %s93
      %s96 = sshll.u32 [#allocation8], 4
      %s97 = int_to_ptr.vmem [resolvable:$true] %s96
      %99 = dma.vmem_to_hbm [thread:$0]  %s97, 16, %s3, [#allocation4]
    $region37: #{tpu_custom_call.1} parent=1 // pred_fallthru
      _
    // Predicated region
    $region38: #{tpu_custom_call.1} parent=1 // pred_check
      _
    $region39: #{tpu_custom_call.1} parent=1 // pred_check_branch
      %101 = sbr.rel (0) target = $region41
    $region40: #{tpu_custom_call.1} parent=1 // pred_region
      %102 = dma.done [#allocation4], 16
    $region41: #{tpu_custom_call.1} parent=1 // pred_fallthru
      _
    %103 = vsyncpa [#allocation3], 1
    %104 = vsyncpa [#allocation6], 1
    %105 = vsyncpa [#allocation4], 1

</llo_original>
